<compile_context>
chip_gen: v5e
topology: v5e:2x2
jax: 0.10.0
libtpu: 0.0.40
codegen_flags: <defaults>
</compile_context>

<pallas_src>
import functools

import jax
import jax.numpy as jnp
from jax import lax
from jax.experimental import pallas as pl
from jax.experimental.pallas import tpu as pltpu

_LN_EPS = 1e-5


def _round_up(a, b):
    return (a + b - 1) // b * b


def _vmem_limit(need_bytes):
    # Never request more than 56 MiB (v7x physical per-TC VMEM is 64 MiB;
    # leave headroom for internal scratch); floor at the 32 MiB default.
    return int(min(56 * 1024 * 1024, max(32 * 1024 * 1024, 2 * int(need_bytes))))


def _ln_qkv_kernel(x_ref, g_ref, b_ref, w_ref, o_ref):
    """Fused LayerNorm + bias-free QKV projection on a (tm, dim) row tile."""
    x = x_ref[...].astype(jnp.float32)
    mu = jnp.mean(x, axis=-1, keepdims=True)
    xc = x - mu
    var = jnp.mean(xc * xc, axis=-1, keepdims=True)
    xn = xc * lax.rsqrt(var + _LN_EPS)
    y = xn * g_ref[...].astype(jnp.float32) + b_ref[...].astype(jnp.float32)
    # Cast to the weight dtype so bf16 weights run the MXU in bf16, f32 acc.
    o_ref[...] = jnp.dot(y.astype(w_ref.dtype), w_ref[...],
                         preferred_element_type=jnp.float32).astype(o_ref.dtype)


def _attn_out_kernel(qkv_ref, c_ref, z_ref, w_ref, bias_ref, o_ref, ctx_ref,
                     *, heads, scale):
    """Per-batch attention: head loop in-kernel + single K=dim out-projection."""
    n = qkv_ref.shape[1]
    dim = w_ref.shape[0]
    d = dim // heads

    # Canny/noise normalization is head-independent: compute once per batch.
    c = c_ref[0].astype(jnp.float32) + 1.0          # (1, n); padded col 0 -> 0
    c = c / jnp.sum(c, axis=-1, keepdims=True)
    z = z_ref[0].astype(jnp.float32)                # (1, n); padded col 0 = 0
    z = z / jnp.sum(z, axis=-1, keepdims=True)
    cz = c + z

    col = lax.broadcasted_iota(jnp.int32, (1, n), 1)
    rows = lax.broadcasted_iota(jnp.int32, (n, n), 0)

    qkv = qkv_ref[0]                                # (n, 3*dim), input dtype

    # heads is small & static -> unrolled loop with static lane slices.
    for h in range(heads):
        q = qkv[:, h * d:(h + 1) * d]                               # (n, d)
        k = qkv[:, dim + h * d: dim + (h + 1) * d]                  # (n, d)
        v = qkv[:, 2 * dim + h * d: 2 * dim + (h + 1) * d]          # (n, d)

        # dots = (q k^T) * scale  (contract on d, f32 accumulation).
        dots = lax.dot_general(q, k, (((1,), (1,)), ((), ())),
                               preferred_element_type=jnp.float32) * scale

        # CLS row (row 0): softmax over keys 1..n-1, then add the normalized
        # (canny + 1) and noise maps (broadcast over heads).
        row0 = dots[0:1, :]
        masked = jnp.where(col == 0, -jnp.inf, row0)
        m0 = jnp.max(masked, axis=-1, keepdims=True)
        e0 = jnp.exp(masked - m0)
        sm0 = e0 / jnp.sum(e0, axis=-1, keepdims=True)              # col 0 -> 0
        new_row0 = jnp.where(col == 0, row0, sm0 + cz)
        dots = jnp.where(rows == 0, new_row0, dots)

        # Softmax over keys.
        m = jnp.max(dots, axis=-1, keepdims=True)
        e = jnp.exp(dots - m)
        attn = e / jnp.sum(e, axis=-1, keepdims=True)
        # TODO(synk): nn.Dropout(p=0.1) on attn is eval-mode identity here; the
        # training-mode stochastic mask (pltpu.prng_*) is not implemented.

        # Per-head context written into its column slot of the (n, dim) scratch.
        ctx_ref[:, h * d:(h + 1) * d] = jnp.dot(
            attn.astype(v.dtype), v, preferred_element_type=jnp.float32)

    # Single output projection with K = dim (instead of `heads` K=d matmuls).
    ctx = ctx_ref[...]
    o_ref[0] = (jnp.dot(ctx.astype(w_ref.dtype), w_ref[...],
                        preferred_element_type=jnp.float32)
                + bias_ref[...].astype(jnp.float32)).astype(o_ref.dtype)


def attention_pallas(x, canny, noise, gamma, beta, w_qkv, w_out, b_out,
                     *, heads, tm=512):
    """Forward pass of Attention(dim, heads) with mask=None (eval mode).

    x:     (b, n, dim) with n = 1 + p1*p2 (CLS token + patches)
    canny: (b, 1, p1, p2);  noise: (b, p1, p2)
    gamma/beta: (dim,) LayerNorm affine (kept f32)
    w_qkv: (dim, 3*dim) == to_qkv.weight.T (bias-free)
    w_out: (dim, dim) == to_out.weight.T;  b_out: (dim,)
    Weights / x may be bf16 for bf16 MXU matmuls with f32 accumulation.
    """
    b, n, dim = x.shape
    assert dim % heads == 0, "dim must be divisible by heads"
    d = dim // heads
    scale = float(dim) ** -0.5
    isz_x = jnp.dtype(x.dtype).itemsize
    isz_w = jnp.dtype(w_qkv.dtype).itemsize

    # ---------------- kernel 1: LayerNorm + QKV over row tiles ----------------
    M = b * n
    tm = max(8, _round_up(min(tm, M), 8))
    m_pad = _round_up(M, tm)
    x2 = x.reshape(M, dim)
    if m_pad != M:
        x2 = jnp.pad(x2, ((0, m_pad - M), (0, 0)))
    g2 = gamma.reshape(1, dim)
    bt2 = beta.reshape(1, dim)

    # TODO(synk): for very large dim in f32 (e.g. dim>=1280 on v7x) the resident
    # double-buffered W_qkv exceeds the 56 MiB cap; a K-tiled fallback (grid over
    # dim//tk with an f32 accumulator) is not implemented.
    # TODO(synk): constant-index blocks (W_qkv, gamma, beta) could be single-
    # buffered via pipeline_mode=pl.Buffered(1) to halve their VMEM footprint.
    need1 = (2 * (tm * dim * isz_x + tm * 3 * dim * isz_x
                  + dim * 3 * dim * isz_w) + 8 * dim)
    qkv = pl.pallas_call(
        _ln_qkv_kernel,
        out_shape=jax.ShapeDtypeStruct((m_pad, 3 * dim), x.dtype),
        grid_spec=pltpu.PrefetchScalarGridSpec(
            num_scalar_prefetch=0,
            grid=(m_pad // tm,),
            in_specs=[
                pl.BlockSpec((tm, dim), lambda i: (i, 0)),       # x row tile
                pl.BlockSpec((1, dim), lambda i: (0, 0)),        # LN gamma
                pl.BlockSpec((1, dim), lambda i: (0, 0)),        # LN beta
                pl.BlockSpec((dim, 3 * dim), lambda i: (0, 0)),  # W_qkv (resident)
            ],
            out_specs=pl.BlockSpec((tm, 3 * dim), lambda i: (i, 0)),
        ),
        compiler_params=pltpu.CompilerParams(
            dimension_semantics=("parallel",),
            vmem_limit_bytes=_vmem_limit(need1)),
        cost_estimate=pl.CostEstimate(
            flops=2 * m_pad * dim * 3 * dim + 10 * m_pad * dim,
            transcendentals=m_pad,
            bytes_accessed=isz_x * m_pad * 4 * dim + isz_w * 3 * dim * dim),
    )(x2, g2, bt2, w_qkv)

    # Free reshape only (no transposes / extra HBM round trip): kernel 2
    # consumes qkv in exactly the layout kernel 1 produced.
    qkv = qkv[:M].reshape(b, n, 3 * dim)

    # Flatten patch grids and prepend one column so rows have length n.
    # Pad values (-1 for canny, 0 for noise) contribute nothing to the in-kernel
    # sums, and the CLS column of these rows is never used.
    c_flat = canny.reshape(b, -1).astype(jnp.float32)
    z_flat = noise.reshape(b, -1).astype(jnp.float32)
    assert c_flat.shape[1] == n - 1 and z_flat.shape[1] == n - 1
    c_pad = jnp.concatenate(
        [jnp.full((b, 1), -1.0, jnp.float32), c_flat], axis=1).reshape(b, 1, n)
    z_pad = jnp.concatenate(
        [jnp.zeros((b, 1), jnp.float32), z_flat], axis=1).reshape(b, 1, n)
    b_out_r = b_out.reshape(1, dim).astype(jnp.float32)

    # ------------- kernel 2: per-batch attention + fused out-projection -------------
    # TODO(synk): n / dim are not padded to sublane/lane multiples here; at toy
    # sizes (n=17, dim=64) the output stores are masked, which is acceptable.
    need2 = (2 * (n * 3 * dim * isz_x + n * dim * isz_x)
             + dim * dim * isz_w + 4 * dim + 8 * 2 * n
             + 4 * (n * dim + 2 * n * n + 3 * n * d))
    out = pl.pallas_call(
        functools.partial(_attn_out_kernel, heads=heads, scale=scale),
        out_shape=jax.ShapeDtypeStruct((b, n, dim), x.dtype),
        grid_spec=pltpu.PrefetchScalarGridSpec(
            num_scalar_prefetch=0,
            grid=(b,),
            in_specs=[
                pl.BlockSpec((1, n, 3 * dim), lambda i: (i, 0, 0)),  # qkv (per batch)
                pl.BlockSpec((1, 1, n), lambda i: (i, 0, 0)),        # canny (padded)
                pl.BlockSpec((1, 1, n), lambda i: (i, 0, 0)),        # noise (padded)
                pl.BlockSpec((dim, dim), lambda i: (0, 0)),          # W_out (resident)
                pl.BlockSpec((1, dim), lambda i: (0, 0)),            # b_out
            ],
            out_specs=pl.BlockSpec((1, n, dim), lambda i: (i, 0, 0)),
            scratch_shapes=[pltpu.VMEM((n, dim), jnp.float32)],      # ctx assembly
        ),
        compiler_params=pltpu.CompilerParams(
            dimension_semantics=("parallel",),
            vmem_limit_bytes=_vmem_limit(need2)),
        cost_estimate=pl.CostEstimate(
            flops=b * (4 * n * n * dim + 2 * n * dim * dim + 8 * heads * n * n),
            transcendentals=b * heads * (n * n + n),
            bytes_accessed=(isz_x * b * n * 4 * dim + isz_w * dim * dim
                            + 4 * (2 * b * n + dim))),
    )(qkv, c_pad, z_pad, w_out, b_out_r)

    return out


def attention_ref(x, canny, noise, gamma, beta, w_qkv, w_out, b_out, *, heads):
    """Pure-JAX reference mirroring the PyTorch forward (mask=None, eval)."""
    b, n, dim = x.shape
    d = dim // heads
    scale = float(dim) ** -0.5
    mu = jnp.mean(x, axis=-1, keepdims=True)
    xc = x - mu
    var = jnp.mean(xc * xc, axis=-1, keepdims=True)
    xn = xc * lax.rsqrt(var + _LN_EPS) * gamma + beta
    qkv = (xn @ w_qkv).reshape(b, n, 3, heads, d)
    q = jnp.transpose(qkv[:, :, 0], (0, 2, 1, 3))
    k = jnp.transpose(qkv[:, :, 1], (0, 2, 1, 3))
    v = jnp.transpose(qkv[:, :, 2], (0, 2, 1, 3))
    dots = jnp.einsum('bhid,bhjd->bhij', q, k) * scale
    attn_map = jax.nn.softmax(dots[:, :, 0, 1:], axis=-1)
    c = canny.reshape(b, -1) + 1.0
    c = c / jnp.sum(c, axis=1, keepdims=True)
    z = noise.reshape(b, -1)
    z = z / jnp.sum(z, axis=1, keepdims=True)
    attn_map = attn_map + c[:, None, :] + z[:, None, :]
    dots = dots.at[:, :, 0, 1:].set(attn_map)
    attn = jax.nn.softmax(dots, axis=-1)
    out = jnp.einsum('bhij,bhjd->bhid', attn, v)
    out = jnp.transpose(out, (0, 2, 1, 3)).reshape(b, n, dim)
    return out @ w_out + b_out


if __name__ == "__main__":
    b, p, dim, heads = 2, 4, 64, 8      # n = 1 (CLS) + 4*4 patches = 17
    n = 1 + p * p

    key = jax.random.PRNGKey(0)
    kx, kc, kz, kg, kb, kw1, kw2, kb2 = jax.random.split(key, 8)

    x = jax.random.normal(kx, (b, n, dim), dtype=jnp.float32)
    canny = jax.random.uniform(kc, (b, 1, p, p), jnp.float32)           # edge map
    noise = jax.random.uniform(kz, (b, p, p), jnp.float32, 0.1, 1.0)    # noise map

    gamma = 1.0 + 0.1 * jax.random.normal(kg, (dim,), dtype=jnp.float32)
    beta = 0.1 * jax.random.normal(kb, (dim,), dtype=jnp.float32)
    lim = 1.0 / dim ** 0.5
    w_qkv = jax.random.uniform(kw1, (dim, 3 * dim), jnp.float32, -lim, lim)
    w_out = jax.random.uniform(kw2, (dim, dim), jnp.float32, -lim, lim)
    b_out = jax.random.uniform(kb2, (dim,), jnp.float32, -lim, lim)

    ref = attention_ref(x, canny, noise, gamma, beta, w_qkv, w_out, b_out,
                        heads=heads)

    # f32 path: must match the PyTorch/JAX reference tightly.
    out = attention_pallas(x, canny, noise, gamma, beta, w_qkv, w_out, b_out,
                           heads=heads)
    out = jax.block_until_ready(out)
    assert out.shape == (b, n, dim)
    err = float(jnp.max(jnp.abs(out - ref)))
    assert jnp.allclose(out, ref, atol=1e-4, rtol=1e-4), f"f32 mismatch, max err={err}"

    # bf16 weights/activations path (MXU in bf16, f32 accumulation) with a
    # loosened tolerance, per the performance review.
    out_bf16 = attention_pallas(
        x.astype(jnp.bfloat16), canny, noise, gamma, beta,
        w_qkv.astype(jnp.bfloat16), w_out.astype(jnp.bfloat16), b_out,
        heads=heads)
    out_bf16 = jax.block_until_ready(out_bf16).astype(jnp.float32)
    err_bf16 = float(jnp.max(jnp.abs(out_bf16 - ref)))
    assert jnp.allclose(out_bf16, ref, atol=1e-1, rtol=1e-1), \
        f"bf16 mismatch, max err={err_bf16}"

    print("KERNEL_OK")
</pallas_src>

<mosaic_0001>
module attributes {stable_mosaic.version = 11 : i64} {
  func.func @_ln_qkv_kernel(%arg0: i32, %arg1: memref<40x64xf32, #tpu.memory_space<vmem>>, %arg2: memref<1x64xf32, #tpu.memory_space<vmem>>, %arg3: memref<1x64xf32, #tpu.memory_space<vmem>>, %arg4: memref<64x192xf32, #tpu.memory_space<vmem>>, %arg5: memref<40x192xf32, #tpu.memory_space<vmem>>) attributes {dimension_semantics = [#tpu.dimension_semantics<parallel>], iteration_bounds = array<i64: 1>, scalar_prefetch = 0 : i64, scratch_operands = 0 : i64, tpu.core_type = #tpu.core_type<tc>, window_params = [{transform_indices = @transform_0, window_bounds = array<i64: 40, 64>}, {pipeline_mode = #tpu.pipeline_mode<synchronous>, transform_indices = @transform_1, window_bounds = array<i64: 1, 64>}, {pipeline_mode = #tpu.pipeline_mode<synchronous>, transform_indices = @transform_2, window_bounds = array<i64: 1, 64>}, {pipeline_mode = #tpu.pipeline_mode<synchronous>, transform_indices = @transform_3, window_bounds = array<i64: 64, 192>}, {transform_indices = @transform_4, window_bounds = array<i64: 40, 192>}]} {
    %c0 = arith.constant 0 : index
    %c0_0 = arith.constant 0 : index
    %0 = vector.load %arg1[%c0, %c0_0] : memref<40x64xf32, #tpu.memory_space<vmem>>, vector<40x64xf32>
    %cst = arith.constant dense<0.000000e+00> : vector<40xf32>
    %1 = vector.multi_reduction <add>, %0, %cst [1] : vector<40x64xf32> to vector<40xf32>
    %2 = vector.shape_cast %1 : vector<40xf32> to vector<40x1xf32>
    %cst_1 = arith.constant 6.400000e+01 : f32
    %3 = vector.broadcast %cst_1 : f32 to vector<40x1xf32>
    %4 = arith.divf %2, %3 : vector<40x1xf32>
    %5 = vector.broadcast %4 : vector<40x1xf32> to vector<40x64xf32>
    %6 = arith.subf %0, %5 : vector<40x64xf32>
    %7 = arith.mulf %6, %6 : vector<40x64xf32>
    %cst_2 = arith.constant dense<0.000000e+00> : vector<40xf32>
    %8 = vector.multi_reduction <add>, %7, %cst_2 [1] : vector<40x64xf32> to vector<40xf32>
    %9 = vector.shape_cast %8 : vector<40xf32> to vector<40x1xf32>
    %cst_3 = arith.constant 6.400000e+01 : f32
    %10 = vector.broadcast %cst_3 : f32 to vector<40x1xf32>
    %11 = arith.divf %9, %10 : vector<40x1xf32>
    %cst_4 = arith.constant 9.99999974E-6 : f32
    %12 = vector.broadcast %cst_4 : f32 to vector<40x1xf32>
    %13 = arith.addf %11, %12 : vector<40x1xf32>
    %14 = math.rsqrt %13 : vector<40x1xf32>
    %15 = vector.broadcast %14 : vector<40x1xf32> to vector<40x64xf32>
    %16 = arith.mulf %6, %15 : vector<40x64xf32>
    %c0_5 = arith.constant 0 : index
    %c0_6 = arith.constant 0 : index
    %17 = vector.load %arg2[%c0_5, %c0_6] : memref<1x64xf32, #tpu.memory_space<vmem>>, vector<1x64xf32>
    %18 = vector.broadcast %17 : vector<1x64xf32> to vector<40x64xf32>
    %19 = arith.mulf %16, %18 : vector<40x64xf32>
    %c0_7 = arith.constant 0 : index
    %c0_8 = arith.constant 0 : index
    %20 = vector.load %arg3[%c0_7, %c0_8] : memref<1x64xf32, #tpu.memory_space<vmem>>, vector<1x64xf32>
    %21 = vector.broadcast %20 : vector<1x64xf32> to vector<40x64xf32>
    %22 = arith.addf %19, %21 : vector<40x64xf32>
    %c0_9 = arith.constant 0 : index
    %c0_10 = arith.constant 0 : index
    %23 = vector.load %arg4[%c0_9, %c0_10] : memref<64x192xf32, #tpu.memory_space<vmem>>, vector<64x192xf32>
    %cst_11 = arith.constant dense<0.000000e+00> : vector<40x192xf32>
    %24 = tpu.matmul %22, %23, %cst_11 {dimension_numbers = #tpu.dot_dimension_numbers<[1], [0], [0], [1], [0, 0, 1, 1], [], []>} : vector<40x64xf32>, vector<64x192xf32>, vector<40x192xf32> -> vector<40x192xf32>
    %c0_12 = arith.constant 0 : index
    %c0_13 = arith.constant 0 : index
    %25 = vector.load %arg5[%c0_12, %c0_13] : memref<40x192xf32, #tpu.memory_space<vmem>>, vector<40x192xf32>
    tpu.vector_store %arg5[%c0_12, %c0_13], %24 {strides = array<i32>} : memref<40x192xf32, #tpu.memory_space<vmem>>, vector<40x192xf32>,
    return
  }
  func.func @transform_0(%arg0: i32) -> (i32, i32) {
    %c0_i32 = arith.constant 0 : i32
    %c0_i32_0 = arith.constant 0 : i32
    return %arg0, %c0_i32 : i32, i32
  }
  func.func @transform_1(%arg0: i32) -> (i32, i32) {
    %c0_i32 = arith.constant 0 : i32
    %c0_i32_0 = arith.constant 0 : i32
    %c0_i32_1 = arith.constant 0 : i32
    return %c0_i32, %c0_i32_0 : i32, i32
  }
  func.func @transform_2(%arg0: i32) -> (i32, i32) {
    %c0_i32 = arith.constant 0 : i32
    %c0_i32_0 = arith.constant 0 : i32
    %c0_i32_1 = arith.constant 0 : i32
    return %c0_i32, %c0_i32_0 : i32, i32
  }
  func.func @transform_3(%arg0: i32) -> (i32, i32) {
    %c0_i32 = arith.constant 0 : i32
    %c0_i32_0 = arith.constant 0 : i32
    %c0_i32_1 = arith.constant 0 : i32
    return %c0_i32, %c0_i32_0 : i32, i32
  }
  func.func @transform_4(%arg0: i32) -> (i32, i32) {
    %c0_i32 = arith.constant 0 : i32
    %c0_i32_0 = arith.constant 0 : i32
    return %arg0, %c0_i32 : i32, i32
  }
}

</mosaic_0001>

<llo_original>
// kernel: tpu_custom_call.1
$region0: #{tpu_custom_call.1}
  #allocation0 [shape = 'u32[]', space=smem, size = 0x4, offset = 0x4, fixed_abs, tag = 'smem constant byte address 0x4 - core index']
  #allocation1 [shape = 'u32[72,128]{1,0:T(1,128)}', space=vmem, size = 0x9000, scoped, tag = 'internal scratch']
  %s0 = inlined_call_operand.hbm [shape: f32[40,64], index: 0, kind: input, shape index: {}]
  %s1 = inlined_call_operand.hbm [shape: f32[1,64], index: 1, kind: input, shape index: {}]
  %s2 = inlined_call_operand.vmem [shape: f32[1,64], index: 2, kind: input, shape index: {}]
  %s3 = inlined_call_operand.hbm [shape: f32[64,192], index: 3, kind: input, shape index: {}]
  %s4 = inlined_call_operand.hbm [shape: f32[40,192], index: 4, kind: output, shape index: {}]
  %s5 = sld [smem:[#allocation0]]
  $region38: #{tpu_custom_call.1} parent=0
    _
  %s7 = ssub.s32 1, %s5
  %s8 = scalar_select 0, %s7, %s5
  $region1: #{tpu_custom_call.1} parent=0
    #allocation2 [shape = 'u8[20480]{0}', space=vmem, size = 0x5000, scoped, tag = 'input window, operand 0, single buffered']
    #allocation3 [shape = 's32[1]{0}', space=sflag, size = 0x4, scoped, tag = 'scoped memory for tpu_custom_call.1']
    #allocation4 [shape = 's32[1]{0}', space=sflag, size = 0x4, scoped, tag = 'scoped memory for tpu_custom_call.1']
    #allocation5 [shape = 'u8[512]{0}', space=vmem, size = 0x400, scoped, tag = 'input window, operand 1, single buffered']
    #allocation6 [shape = 's32[1]{0}', space=sflag, size = 0x4, scoped, tag = 'scoped memory for tpu_custom_call.1']
    #allocation7 [shape = 'u8[65536]{0}', space=vmem, size = 0x10000, scoped, tag = 'input window, operand 3, single buffered']
    #allocation8 [shape = 'u8[40960]{0}', space=vmem, size = 0xa000, scoped, tag = 'output window, operand 0, single buffered']
    %9 = vsyncpa [#allocation3], 0
    %10 = vsyncpa [#allocation6], 0
    %11 = vsyncpa [#allocation4], 0
    // Predicated region
    $region2: #{tpu_custom_call.1} parent=1 // pred_check
      _
    $region3: #{tpu_custom_call.1} parent=1 // pred_check_branch
      %13 = sbr.rel (0) target = $region5
    $region4: #{tpu_custom_call.1} parent=1 // pred_region
      %15 = vsyncadd [#allocation3], 0
      %s16 = sshll.u32 %s0, 4
      %s17 = int_to_ptr.hbm [resolvable:$true] %s16
      %s18 = sshll.u32 [#allocation2], 4
      %s19 = int_to_ptr.vmem [resolvable:$true] %s18
      %24 = dma.hbm_to_vmem [thread:$0]  %s17, 640, %s19, [#allocation3], 128, 128, 8
    $region5: #{tpu_custom_call.1} parent=1 // pred_fallthru
      _
    // Predicated region
    $region6: #{tpu_custom_call.1} parent=1 // pred_check
      _
    $region7: #{tpu_custom_call.1} parent=1 // pred_check_branch
      %26 = sbr.rel (0) target = $region9
    $region8: #{tpu_custom_call.1} parent=1 // pred_region
      %28 = vsyncadd [#allocation6], 0
      %s30 = sshll.u32 %s1, 4
      %s31 = int_to_ptr.hbm [resolvable:$true] %s30
      %s32 = sshll.u32 [#allocation5], 4
      %s33 = int_to_ptr.vmem [resolvable:$true] %s32
      %35 = dma.hbm_to_vmem [thread:$0]  %s31, 16, %s33, [#allocation6]
    $region9: #{tpu_custom_call.1} parent=1 // pred_fallthru
      _
    // Predicated region
    $region10: #{tpu_custom_call.1} parent=1 // pred_check
      _
    $region11: #{tpu_custom_call.1} parent=1 // pred_check_branch
      %37 = sbr.rel (0) target = $region13
    $region12: #{tpu_custom_call.1} parent=1 // pred_region
      _
    $region13: #{tpu_custom_call.1} parent=1 // pred_fallthru
      _
    // Predicated region
    $region14: #{tpu_custom_call.1} parent=1 // pred_check
      _
    $region15: #{tpu_custom_call.1} parent=1 // pred_check_branch
      %39 = sbr.rel (0) target = $region17
    $region16: #{tpu_custom_call.1} parent=1 // pred_region
      %41 = vsyncadd [#allocation6], 0
      %s42 = sshll.u32 %s3, 4
      %s43 = int_to_ptr.hbm [resolvable:$true] %s42
      %s44 = sshll.u32 [#allocation7], 4
      %s45 = int_to_ptr.vmem [resolvable:$true] %s44
      %50 = dma.hbm_to_vmem [thread:$0]  %s43, 2048, %s45, [#allocation6], 256, 256, 16
    $region17: #{tpu_custom_call.1} parent=1 // pred_fallthru
      _
    // Predicated region
    $region18: #{tpu_custom_call.1} parent=1 // pred_check
      _
    $region19: #{tpu_custom_call.1} parent=1 // pred_check_branch
      %52 = sbr.rel (0) target = $region21
    $region20: #{tpu_custom_call.1} parent=1 // pred_region
      %54 = dma.done [#allocation3], 640
    $region21: #{tpu_custom_call.1} parent=1 // pred_fallthru
      _
    // Predicated region
    $region22: #{tpu_custom_call.1} parent=1 // pred_check
      _
    $region23: #{tpu_custom_call.1} parent=1 // pred_check_branch
      %56 = sbr.rel (0) target = $region25
    $region24: #{tpu_custom_call.1} parent=1 // pred_region
      %58 = dma.done [#allocation6], 16
    $region25: #{tpu_custom_call.1} parent=1 // pred_fallthru
      _
    // Predicated region
    $region26: #{tpu_custom_call.1} parent=1 // pred_check
      _
    $region27: #{tpu_custom_call.1} parent=1 // pred_check_branch
      %60 = sbr.rel (0) target = $region29
    $region28: #{tpu_custom_call.1} parent=1 // pred_region
      %62 = dma.done [#allocation6], 2048
    $region29: #{tpu_custom_call.1} parent=1 // pred_fallthru
      _
    %v63 = vld [vmem:[#allocation2] sm:$0xff]
    %v64 = vld [vmem:[#allocation2 + $0x8] sm:$0xff]
    %v65 = vld [vmem:[#allocation2 + $0x10] sm:$0xff]
    %v66 = vld [vmem:[#allocation2 + $0x18] sm:$0xff]
    %v67 = vld [vmem:[#allocation2 + $0x20] sm:$0xff]
    %vm68 = vcmask 523264
    %v69 = vsel %vm68, %v63, 0.0
    %70 = vadd.xlane.f32.xlu0 %v69
    %v71 = vpop.xlane.xlu0 %70
    %v72 = vsel %vm68, %v64, 0.0
    %73 = vadd.xlane.f32.xlu0 %v72
    %v74 = vpop.xlane.xlu0 %73
    %v75 = vsel %vm68, %v65, 0.0
    %76 = vadd.xlane.f32.xlu0 %v75
    %v77 = vpop.xlane.xlu0 %76
    %v78 = vsel %vm68, %v66, 0.0
    %79 = vadd.xlane.f32.xlu0 %v78
    %v80 = vpop.xlane.xlu0 %79
    %v81 = vsel %vm68, %v67, 0.0
    %82 = vadd.xlane.f32.xlu0 %v81
    %v83 = vpop.xlane.xlu0 %82
    %v84 = vrcp.pop 64.0
    %v85 = vmul.f32 64.0, %v84
    %v86 = vsub.f32 1.0, %v85
    %v87 = vmul.f32 %v84, %v86
    %v88 = vadd.f32 %v84, %v87
    %vm89 = vweird.f32 %v84
    %v90 = vsel %vm89, %v84, %v88
    %v91 = vmul.f32 %v71, %v90
    %v92 = vmul.f32 %v74, %v90
    %v93 = vmul.f32 %v77, %v90
    %v94 = vmul.f32 %v80, %v90
    %v95 = vmul.f32 %v83, %v90
    %v96 = vsub.f32 %v63, %v91
    %v97 = vsub.f32 %v64, %v92
    %v98 = vsub.f32 %v65, %v93
    %v99 = vsub.f32 %v66, %v94
    %v100 = vsub.f32 %v67, %v95
    %v101 = vmul.f32 %v96, %v96
    %v102 = vmul.f32 %v97, %v97
    %v103 = vmul.f32 %v98, %v98
    %v104 = vmul.f32 %v99, %v99
    %v105 = vmul.f32 %v100, %v100
    %v106 = vsel %vm68, %v101, 0.0
    %107 = vadd.xlane.f32.xlu0 %v106
    %v108 = vpop.xlane.xlu0 %107
    %v109 = vsel %vm68, %v102, 0.0
    %110 = vadd.xlane.f32.xlu0 %v109
    %v111 = vpop.xlane.xlu0 %110
    %v112 = vsel %vm68, %v103, 0.0
    %113 = vadd.xlane.f32.xlu0 %v112
    %v114 = vpop.xlane.xlu0 %113
    %v115 = vsel %vm68, %v104, 0.0
    %116 = vadd.xlane.f32.xlu0 %v115
    %v117 = vpop.xlane.xlu0 %116
    %v118 = vsel %vm68, %v105, 0.0
    %119 = vadd.xlane.f32.xlu0 %v118
    %v120 = vpop.xlane.xlu0 %119
    %v121 = vmul.f32 %v108, %v90
    %v122 = vmul.f32 %v111, %v90
    %v123 = vmul.f32 %v114, %v90
    %v124 = vmul.f32 %v117, %v90
    %v125 = vmul.f32 %v120, %v90
    %v126 = vadd.f32 %v121, 1e-05
    %v127 = vadd.f32 %v122, 1e-05
    %v128 = vadd.f32 %v123, 1e-05
    %v129 = vadd.f32 %v124, 1e-05
    %v130 = vadd.f32 %v125, 1e-05
    %v131 = vrsqrt.pop %v126
    %v132 = vmul.f32 %v131, %v126
    %v133 = vmul.f32 %v132, %v131
    %v134 = vmul.f32 0.5, %v133
    %v135 = vsub.f32 1.5, %v134
    %v136 = vmul.f32 %v131, %v135
    %vm137 = vweird.f32 %v126
    %vm138 = vweird.f32 %v131
    %vm139 = vmor %vm137, %vm138
    %v140 = vsel %vm139, %v131, %v136
    %v141 = vrsqrt.pop %v127
    %v142 = vmul.f32 %v141, %v127
    %v143 = vmul.f32 %v142, %v141
    %v144 = vmul.f32 0.5, %v143
    %v145 = vsub.f32 1.5, %v144
    %v146 = vmul.f32 %v141, %v145
    %vm147 = vweird.f32 %v127
    %vm148 = vweird.f32 %v141
    %vm149 = vmor %vm147, %vm148
    %v150 = vsel %vm149, %v141, %v146
    %v151 = vrsqrt.pop %v128
    %v152 = vmul.f32 %v151, %v128
    %v153 = vmul.f32 %v152, %v151
    %v154 = vmul.f32 0.5, %v153
    %v155 = vsub.f32 1.5, %v154
    %v156 = vmul.f32 %v151, %v155
    %vm157 = vweird.f32 %v128
    %vm158 = vweird.f32 %v151
    %vm159 = vmor %vm157, %vm158
    %v160 = vsel %vm159, %v151, %v156
    %v161 = vrsqrt.pop %v129
    %v162 = vmul.f32 %v161, %v129
    %v163 = vmul.f32 %v162, %v161
    %v164 = vmul.f32 0.5, %v163
    %v165 = vsub.f32 1.5, %v164
    %v166 = vmul.f32 %v161, %v165
    %vm167 = vweird.f32 %v129
    %vm168 = vweird.f32 %v161
    %vm169 = vmor %vm167, %vm168
    %v170 = vsel %vm169, %v161, %v166
    %v171 = vrsqrt.pop %v130
    %v172 = vmul.f32 %v171, %v130
    %v173 = vmul.f32 %v172, %v171
    %v174 = vmul.f32 0.5, %v173
    %v175 = vsub.f32 1.5, %v174
    %v176 = vmul.f32 %v171, %v175
    %vm177 = vweird.f32 %v130
    %vm178 = vweird.f32 %v171
    %vm179 = vmor %vm177, %vm178
    %v180 = vsel %vm179, %v171, %v176
    %v181 = vmul.f32 %v96, %v140
    %v182 = vmul.f32 %v97, %v150
    %v183 = vmul.f32 %v98, %v160
    %v184 = vmul.f32 %v99, %v170
    %v185 = vmul.f32 %v100, %v180
    %v186 = vld [vmem:[#allocation5] sm:$0x1]
    %v188 = vperm.slane %v186, 0
    %v190 = vmul.f32 %v181, %v188
    %v191 = vmul.f32 %v182, %v188
    %v192 = vmul.f32 %v183, %v188
    %v193 = vmul.f32 %v184, %v188
    %v194 = vmul.f32 %v185, %v188
    %v195 = vld [vmem:[%s2] sm:$0x1]
    %v197 = vperm.slane %v195, 0
    %v199 = vadd.f32 %v190, %v197
    %v200 = vadd.f32 %v191, %v197
    %v201 = vadd.f32 %v192, %v197
    %v202 = vadd.f32 %v193, %v197
    %v203 = vadd.f32 %v194, %v197
    %v204 = vld [vmem:[#allocation7] sm:$0xff]
    %v205 = vld [vmem:[#allocation7 + $0x8] sm:$0xff]
    %v206 = vld [vmem:[#allocation7 + $0x10] sm:$0xff]
    %v207 = vld [vmem:[#allocation7 + $0x18] sm:$0xff]
    %v208 = vld [vmem:[#allocation7 + $0x20] sm:$0xff]
    %v209 = vld [vmem:[#allocation7 + $0x28] sm:$0xff]
    %v210 = vld [vmem:[#allocation7 + $0x30] sm:$0xff]
    %v211 = vld [vmem:[#allocation7 + $0x38] sm:$0xff]
    %v212 = vld [vmem:[#allocation7 + $0x40] sm:$0xff]
    %v213 = vld [vmem:[#allocation7 + $0x48] sm:$0xff]
    %v214 = vld [vmem:[#allocation7 + $0x50] sm:$0xff]
    %v215 = vld [vmem:[#allocation7 + $0x58] sm:$0xff]
    %v216 = vld [vmem:[#allocation7 + $0x60] sm:$0xff]
    %v217 = vld [vmem:[#allocation7 + $0x68] sm:$0xff]
    %v218 = vld [vmem:[#allocation7 + $0x70] sm:$0xff]
    %v219 = vld [vmem:[#allocation7 + $0x78] sm:$0xff]
    %v221 = vsel %vm68, %v199, 0
    %v224 = vsel %vm68, %v200, 0
    %v227 = vsel %vm68, %v201, 0
    %v230 = vsel %vm68, %v202, 0
    %v233 = vsel %vm68, %v203, 0
    %235 = vmatpush.msra.mxu0 0.0
    %236 = vmatpush.msra.mxu0 0.0
    %237 = vmatpush.msra.mxu0 0.0
    %238 = vmatpush.msra.mxu0 0.0
    %239 = vmatpush.msra.mxu0 0.0
    %240 = vmatpush.msra.mxu0 0.0
    %241 = vmatpush.msra.mxu0 0.0
    %242 = vmatpush.msra.mxu0 0.0
    %243 = vmatpush.msra.mxu0 %v218
    %244 = vmatpush.msra.mxu0 %v216
    %245 = vmatpush.msra.mxu0 %v214
    %246 = vmatpush.msra.mxu0 %v212
    %247 = vmatpush.msra.mxu0 %v210
    %248 = vmatpush.msra.mxu0 %v208
    %249 = vmatpush.msra.mxu0 %v206
    %250 = vmatpush.msra.mxu0 %v204
    %251 = vmatmul.f32.gmra.mxu0 %v221
    %v252 = vpop.f32.mrf.mxu0
    %v253 = vadd.f32 0.0, %v252
    %254 = vmatmul.f32.gmra.mxu0 %v224
    %v255 = vpop.f32.mrf.mxu0
    %v256 = vadd.f32 0.0, %v255
    %257 = vmatmul.f32.gmra.mxu0 %v227
    %v258 = vpop.f32.mrf.mxu0
    %v259 = vadd.f32 0.0, %v258
    %260 = vmatmul.f32.gmra.mxu0 %v230
    %v261 = vpop.f32.mrf.mxu0
    %v262 = vadd.f32 0.0, %v261
    %263 = vmatmul.f32.gmra.mxu0 %v233
    %v264 = vpop.f32.mrf.mxu0
    %v265 = vadd.f32 0.0, %v264
    %266 = vdwg.mxu0
    %267 = vmatpush.msra.mxu0 0.0
    %268 = vmatpush.msra.mxu0 0.0
    %269 = vmatpush.msra.mxu0 0.0
    %270 = vmatpush.msra.mxu0 0.0
    %271 = vmatpush.msra.mxu0 0.0
    %272 = vmatpush.msra.mxu0 0.0
    %273 = vmatpush.msra.mxu0 0.0
    %274 = vmatpush.msra.mxu0 0.0
    %275 = vmatpush.msra.mxu0 %v219
    %276 = vmatpush.msra.mxu0 %v217
    %277 = vmatpush.msra.mxu0 %v215
    %278 = vmatpush.msra.mxu0 %v213
    %279 = vmatpush.msra.mxu0 %v211
    %280 = vmatpush.msra.mxu0 %v209
    %281 = vmatpush.msra.mxu0 %v207
    %282 = vmatpush.msra.mxu0 %v205
    %283 = vmatmul.f32.gmra.mxu0 %v221
    %v284 = vpop.f32.mrf.mxu0
    %v285 = vadd.f32 0.0, %v284
    %286 = vmatmul.f32.gmra.mxu0 %v224
    %v287 = vpop.f32.mrf.mxu0
    %v288 = vadd.f32 0.0, %v287
    %289 = vmatmul.f32.gmra.mxu0 %v227
    %v290 = vpop.f32.mrf.mxu0
    %v291 = vadd.f32 0.0, %v290
    %292 = vmatmul.f32.gmra.mxu0 %v230
    %v293 = vpop.f32.mrf.mxu0
    %v294 = vadd.f32 0.0, %v293
    %295 = vmatmul.f32.gmra.mxu0 %v233
    %v296 = vpop.f32.mrf.mxu0
    %v297 = vadd.f32 0.0, %v296
    %298 = vdwg.mxu0
    %299 = vst [vmem:[#allocation8] sm:$0xff] %v253
    %300 = vst.msk [vmem:[#allocation8 + $0x8] sm:$0xff] %vm68, %v285
    %301 = vst [vmem:[#allocation8 + $0x10] sm:$0xff] %v256
    %302 = vst.msk [vmem:[#allocation8 + $0x18] sm:$0xff] %vm68, %v288
    %303 = vst [vmem:[#allocation8 + $0x20] sm:$0xff] %v259
    %304 = vst.msk [vmem:[#allocation8 + $0x28] sm:$0xff] %vm68, %v291
    %305 = vst [vmem:[#allocation8 + $0x30] sm:$0xff] %v262
    %306 = vst.msk [vmem:[#allocation8 + $0x38] sm:$0xff] %vm68, %v294
    %307 = vst [vmem:[#allocation8 + $0x40] sm:$0xff] %v265
    %308 = vst.msk [vmem:[#allocation8 + $0x48] sm:$0xff] %vm68, %v297
    // Predicated region
    $region30: #{tpu_custom_call.1} parent=1 // pred_check
      _
    $region31: #{tpu_custom_call.1} parent=1 // pred_check_branch
      %310 = sbr.rel (0) target = $region33
    $region32: #{tpu_custom_call.1} parent=1 // pred_region
      %312 = vsyncadd [#allocation4], 0
      %s313 = sshll.u32 [#allocation8], 4
      %s314 = int_to_ptr.vmem [resolvable:$true] %s313
      %s315 = sshll.u32 %s4, 4
      %s316 = int_to_ptr.hbm [resolvable:$true] %s315
      %321 = dma.vmem_to_hbm [thread:$0]  %s314, 1280, %s316, [#allocation4], 256, 256, 16
    $region33: #{tpu_custom_call.1} parent=1 // pred_fallthru
      _
    // Predicated region
    $region34: #{tpu_custom_call.1} parent=1 // pred_check
      _
    $region35: #{tpu_custom_call.1} parent=1 // pred_check_branch
      %323 = sbr.rel (0) target = $region37
    $region36: #{tpu_custom_call.1} parent=1 // pred_region
      %325 = dma.done [#allocation4], 1280
    $region37: #{tpu_custom_call.1} parent=1 // pred_fallthru
      _
    %326 = vsyncpa [#allocation3], 1
    %327 = vsyncpa [#allocation6], 1
    %328 = vsyncpa [#allocation4], 1

</llo_original>
